<compile_context>
chip_gen: v5e
topology: v5e:2x2
jax: 0.10.0
libtpu: 0.0.40
codegen_flags: <defaults>
</compile_context>

<pallas_src>
import functools

import jax
import jax.numpy as jnp
from jax.experimental import pallas as pl
from jax.experimental.pallas import tpu as pltpu

_LANE = 128
_DEFAULT_VMEM_CAP = 64 * 1024 * 1024  # conservative fallback (v7x per-TC VMEM)


def _vmem_capacity_bytes() -> int:
    """Best-effort query of per-core VMEM capacity; conservative fallback."""
    try:
        info = pltpu.get_tpu_info()
        cap = getattr(info, "vmem_capacity_bytes", None)
        if cap:
            return int(cap)
    except Exception:
        pass
    return _DEFAULT_VMEM_CAP


def _round_up(x: int, m: int) -> int:
    return ((x + m - 1) // m) * m


def _cosine_sim_kernel(e1_ref, e2_ref, sim_ref, w12_ref, w1_ref, w2_ref, *,
                       eps: float, hidden: int, mask_h: bool):
    k = pl.program_id(1)

    @pl.when(k == 0)
    def _init():
        w12_ref[...] = jnp.zeros_like(w12_ref)
        w1_ref[...] = jnp.zeros_like(w1_ref)
        w2_ref[...] = jnp.zeros_like(w2_ref)

    # (tb, th) tiles; accumulate in f32 (matches torch f32, safe for bf16 inputs).
    x1 = e1_ref[...].astype(jnp.float32)
    x2 = e2_ref[...].astype(jnp.float32)

    if mask_h:
        # Trailing hidden block is partial: mask padded lanes before the reductions.
        th = e1_ref.shape[-1]
        col = jax.lax.broadcasted_iota(jnp.int32, x1.shape, dimension=1)
        valid = (k * th + col) < hidden
        x1 = jnp.where(valid, x1, 0.0)
        x2 = jnp.where(valid, x2, 0.0)

    # Per-row partial reductions along the hidden (lane) axis -> (tb, 1).
    w12_ref[...] += jnp.sum(x1 * x2, axis=-1, keepdims=True)
    w1_ref[...] += jnp.sum(x1 * x1, axis=-1, keepdims=True)
    w2_ref[...] += jnp.sum(x2 * x2, axis=-1, keepdims=True)

    @pl.when(k == pl.num_programs(1) - 1)
    def _finalize():
        # cosine_similarity: w12 / (max(||x1||, eps) * max(||x2||, eps)).
        # rsqrt lowers to the EUP (own VLIW slot); clamping each squared norm
        # separately also avoids f32 overflow of w1 * w2 for huge-norm rows.
        inv_norm = jax.lax.rsqrt(jnp.maximum(w1_ref[...], eps * eps)) * jax.lax.rsqrt(
            jnp.maximum(w2_ref[...], eps * eps)
        )
        sim_ref[...] = w12_ref[...] * inv_norm


def _pick_blocks(batch: int, hidden: int, itemsize: int, vmem_cap: int,
                 block_rows, block_cols):
    """Pick (tb, th, num_h_blocks, mask_h) from shapes + VMEM capacity."""
    # Per-input block budget: 2 inputs x 2 pipeline buffers x budget <= ~VMEM/2.
    budget = min(16 << 20, vmem_cap // 8)
    # Sublane tile rows: 8 for f32, 16 for bf16, 32 for int8/fp8.
    row_mult = max(8, 32 // max(itemsize, 1))

    # ---- hidden tile (lane axis): full H if it fits, else a multiple of 128 ----
    if block_cols is not None:
        th = hidden if int(block_cols) >= hidden else max(
            _LANE, (int(block_cols) // _LANE) * _LANE)
    elif row_mult * hidden * itemsize <= budget:
        th = hidden
    else:
        th = max(_LANE, (budget // (row_mult * itemsize)) // _LANE * _LANE)
    th = min(th, hidden)
    num_h = pl.cdiv(hidden, th)
    mask_h = (hidden % th) != 0

    # ---- batch tile (sublane axis) ----
    if block_rows is not None:
        tb = min(int(block_rows), batch)
        if tb < batch:
            tb = max(row_mult, (tb // row_mult) * row_mult)
    else:
        tb = max(row_mult, (budget // max(th * itemsize, 1)) // row_mult * row_mult)
        if tb >= batch:
            # Whole batch fits one block: still aim for ~4 grid steps so both v7x
            # TensorCores get work and DMA/compute can overlap on all chips.
            tb = max(row_mult, _round_up(pl.cdiv(batch, 4), row_mult))
    tb = min(tb, batch)
    return tb, th, num_h, mask_h


def cosine_similarity_loss(emb1: jax.Array, emb2: jax.Array, eps: float = 1e-8,
                           block_rows: int | None = None,
                           block_cols: int | None = None) -> jax.Array:
    """1 - mean(cosine_similarity(emb1, emb2, dim=1)). Inputs: [batch, hidden]."""
    assert emb1.shape == emb2.shape and emb1.ndim == 2
    batch, hidden = emb1.shape
    itemsize = jnp.dtype(emb1.dtype).itemsize
    vmem_cap = _vmem_capacity_bytes()

    tb, th, num_h, mask_h = _pick_blocks(batch, hidden, itemsize, vmem_cap,
                                         block_rows, block_cols)
    grid = (pl.cdiv(batch, tb), num_h)

    kernel = functools.partial(_cosine_sim_kernel, eps=eps, hidden=hidden,
                               mask_h=mask_h)

    # TODO(synk): output is a (tb, 1) lane-1 store (masked vst); only worth making
    # lane-dense if profiling shows store-slot stalls for tiny-H / many-step cases.
    sims = pl.pallas_call(
        kernel,
        out_shape=jax.ShapeDtypeStruct((batch, 1), jnp.float32),
        grid_spec=pltpu.PrefetchScalarGridSpec(
            num_scalar_prefetch=0,
            grid=grid,
            in_specs=[
                pl.BlockSpec((tb, th), lambda i, k: (i, k)),
                pl.BlockSpec((tb, th), lambda i, k: (i, k)),
            ],
            out_specs=pl.BlockSpec((tb, 1), lambda i, k: (i, 0)),
            scratch_shapes=[pltpu.VMEM((tb, 1), jnp.float32)] * 3,
        ),
        compiler_params=pltpu.CompilerParams(
            dimension_semantics=("parallel", "arbitrary"),
            vmem_limit_bytes=max(32 << 20, min(int(vmem_cap * 3 // 4), 100 << 20)),
        ),
        cost_estimate=pl.CostEstimate(
            flops=6 * batch * hidden,
            transcendentals=2 * batch,
            bytes_accessed=2 * batch * hidden * itemsize + batch * 4,
        ),
    )(emb1, emb2)

    # Tiny final reduction in plain JAX (keeps the batch grid axis fully parallel).
    return 1.0 - jnp.mean(sims)


if __name__ == "__main__":
    key = jax.random.PRNGKey(0)
    keys = jax.random.split(key, 8)
    eps = 1e-8

    def ref_loss(a, b):
        a = a.astype(jnp.float32)
        b = b.astype(jnp.float32)
        w12 = jnp.sum(a * b, axis=1)
        n1 = jnp.sqrt(jnp.sum(a * a, axis=1))
        n2 = jnp.sqrt(jnp.sum(b * b, axis=1))
        sim = w12 / (jnp.maximum(n1, eps) * jnp.maximum(n2, eps))
        return 1.0 - jnp.mean(sim)

    # Case 1: nominal small shape from the module spec (single block).
    e1 = jax.random.normal(keys[0], (8, 32), dtype=jnp.float32)
    e2 = jax.random.normal(keys[1], (8, 32), dtype=jnp.float32)
    loss = jax.jit(cosine_similarity_loss)(e1, e2)
    jax.block_until_ready(loss)
    ref = ref_loss(e1, e2)
    assert jnp.allclose(loss, ref, atol=1e-5), (loss, ref)

    # Case 2: batch grid with a partial trailing batch block (B=20, tb=8 -> 3 steps).
    f1 = jax.random.normal(keys[2], (20, 128), dtype=jnp.float32)
    f2 = jax.random.normal(keys[3], (20, 128), dtype=jnp.float32)
    loss2 = jax.jit(functools.partial(cosine_similarity_loss, block_rows=8))(f1, f2)
    jax.block_until_ready(loss2)
    ref2 = ref_loss(f1, f2)
    assert jnp.allclose(loss2, ref2, atol=1e-5), (loss2, ref2)

    # Case 3: hidden-axis tiling / accumulator path (3 full 128-lane H blocks).
    g1 = jax.random.normal(keys[4], (16, 384), dtype=jnp.float32)
    g2 = jax.random.normal(keys[5], (16, 384), dtype=jnp.float32)
    loss3 = jax.jit(functools.partial(cosine_similarity_loss, block_cols=128))(g1, g2)
    jax.block_until_ready(loss3)
    ref3 = ref_loss(g1, g2)
    assert jnp.allclose(loss3, ref3, atol=1e-5), (loss3, ref3)

    # Case 4: hidden tiling with a masked partial trailing H block, bf16 inputs.
    h1 = jax.random.normal(keys[6], (16, 200), dtype=jnp.bfloat16)
    h2 = jax.random.normal(keys[7], (16, 200), dtype=jnp.bfloat16)
    loss4 = jax.jit(functools.partial(cosine_similarity_loss, block_cols=128))(h1, h2)
    jax.block_until_ready(loss4)
    ref4 = ref_loss(h1, h2)
    assert jnp.allclose(loss4, ref4, atol=1e-3), (loss4, ref4)

    print("KERNEL_OK")
</pallas_src>

<mosaic_0001>
module attributes {stable_mosaic.version = 11 : i64} {
  func.func @_cosine_sim_kernel(%arg0: i32, %arg1: i32, %arg2: memref<8x32xf32, #tpu.memory_space<vmem>>, %arg3: memref<8x32xf32, #tpu.memory_space<vmem>>, %arg4: memref<8x1xf32, #tpu.memory_space<vmem>>, %arg5: memref<8x1xf32, #tpu.memory_space<vmem>>, %arg6: memref<8x1xf32, #tpu.memory_space<vmem>>, %arg7: memref<8x1xf32, #tpu.memory_space<vmem>>) attributes {dimension_semantics = [#tpu.dimension_semantics<parallel>, #tpu.dimension_semantics<arbitrary>], iteration_bounds = array<i64: 1, 1>, scalar_prefetch = 0 : i64, scratch_operands = 3 : i64, tpu.core_type = #tpu.core_type<tc>, window_params = [{transform_indices = @transform_0, window_bounds = array<i64: 8, 32>}, {transform_indices = @transform_1, window_bounds = array<i64: 8, 32>}, {transform_indices = @transform_2, window_bounds = array<i64: 8, 1>}]} {
    %c0_i32 = arith.constant 0 : i32
    %0 = arith.cmpi eq, %arg1, %c0_i32 : i32
    %1 = arith.extui %0 : i1 to i32
    %c0_i32_0 = arith.constant 0 : i32
    %2 = arith.cmpi ne, %1, %c0_i32_0 : i32
    scf.if %2 {
      %cst_20 = arith.constant 0.000000e+00 : f32
      %26 = vector.broadcast %cst_20 : f32 to vector<8x1xf32>
      %c0_21 = arith.constant 0 : index
      %c0_22 = arith.constant 0 : index
      %27 = vector.load %arg5[%c0_21, %c0_22] : memref<8x1xf32, #tpu.memory_space<vmem>>, vector<8x1xf32>
      tpu.vector_store %arg5[%c0_21, %c0_22], %26 {strides = array<i32>} : memref<8x1xf32, #tpu.memory_space<vmem>>, vector<8x1xf32>,
      %cst_23 = arith.constant 0.000000e+00 : f32
      %28 = vector.broadcast %cst_23 : f32 to vector<8x1xf32>
      %c0_24 = arith.constant 0 : index
      %c0_25 = arith.constant 0 : index
      %29 = vector.load %arg6[%c0_24, %c0_25] : memref<8x1xf32, #tpu.memory_space<vmem>>, vector<8x1xf32>
      tpu.vector_store %arg6[%c0_24, %c0_25], %28 {strides = array<i32>} : memref<8x1xf32, #tpu.memory_space<vmem>>, vector<8x1xf32>,
      %cst_26 = arith.constant 0.000000e+00 : f32
      %30 = vector.broadcast %cst_26 : f32 to vector<8x1xf32>
      %c0_27 = arith.constant 0 : index
      %c0_28 = arith.constant 0 : index
      %31 = vector.load %arg7[%c0_27, %c0_28] : memref<8x1xf32, #tpu.memory_space<vmem>>, vector<8x1xf32>
      tpu.vector_store %arg7[%c0_27, %c0_28], %30 {strides = array<i32>} : memref<8x1xf32, #tpu.memory_space<vmem>>, vector<8x1xf32>,
    } else {
    }
    %c0 = arith.constant 0 : index
    %c0_1 = arith.constant 0 : index
    %3 = vector.load %arg2[%c0, %c0_1] : memref<8x32xf32, #tpu.memory_space<vmem>>, vector<8x32xf32>
    %c0_2 = arith.constant 0 : index
    %c0_3 = arith.constant 0 : index
    %4 = vector.load %arg3[%c0_2, %c0_3] : memref<8x32xf32, #tpu.memory_space<vmem>>, vector<8x32xf32>
    %c0_4 = arith.constant 0 : index
    %c0_5 = arith.constant 0 : index
    %5 = vector.load %arg5[%c0_4, %c0_5] : memref<8x1xf32, #tpu.memory_space<vmem>>, vector<8x1xf32>
    %6 = arith.mulf %3, %4 : vector<8x32xf32>
    %cst = arith.constant dense<0.000000e+00> : vector<8xf32>
    %7 = vector.multi_reduction <add>, %6, %cst [1] : vector<8x32xf32> to vector<8xf32>
    %8 = vector.shape_cast %7 : vector<8xf32> to vector<8x1xf32>
    %9 = arith.addf %5, %8 : vector<8x1xf32>
    %c0_6 = arith.constant 0 : index
    %c0_7 = arith.constant 0 : index
    %10 = vector.load %arg5[%c0_6, %c0_7] : memref<8x1xf32, #tpu.memory_space<vmem>>, vector<8x1xf32>
    tpu.vector_store %arg5[%c0_6, %c0_7], %9 {strides = array<i32>} : memref<8x1xf32, #tpu.memory_space<vmem>>, vector<8x1xf32>,
    %c0_8 = arith.constant 0 : index
    %c0_9 = arith.constant 0 : index
    %11 = vector.load %arg6[%c0_8, %c0_9] : memref<8x1xf32, #tpu.memory_space<vmem>>, vector<8x1xf32>
    %12 = arith.mulf %3, %3 : vector<8x32xf32>
    %cst_10 = arith.constant dense<0.000000e+00> : vector<8xf32>
    %13 = vector.multi_reduction <add>, %12, %cst_10 [1] : vector<8x32xf32> to vector<8xf32>
    %14 = vector.shape_cast %13 : vector<8xf32> to vector<8x1xf32>
    %15 = arith.addf %11, %14 : vector<8x1xf32>
    %c0_11 = arith.constant 0 : index
    %c0_12 = arith.constant 0 : index
    %16 = vector.load %arg6[%c0_11, %c0_12] : memref<8x1xf32, #tpu.memory_space<vmem>>, vector<8x1xf32>
    tpu.vector_store %arg6[%c0_11, %c0_12], %15 {strides = array<i32>} : memref<8x1xf32, #tpu.memory_space<vmem>>, vector<8x1xf32>,
    %c0_13 = arith.constant 0 : index
    %c0_14 = arith.constant 0 : index
    %17 = vector.load %arg7[%c0_13, %c0_14] : memref<8x1xf32, #tpu.memory_space<vmem>>, vector<8x1xf32>
    %18 = arith.mulf %4, %4 : vector<8x32xf32>
    %cst_15 = arith.constant dense<0.000000e+00> : vector<8xf32>
    %19 = vector.multi_reduction <add>, %18, %cst_15 [1] : vector<8x32xf32> to vector<8xf32>
    %20 = vector.shape_cast %19 : vector<8xf32> to vector<8x1xf32>
    %21 = arith.addf %17, %20 : vector<8x1xf32>
    %c0_16 = arith.constant 0 : index
    %c0_17 = arith.constant 0 : index
    %22 = vector.load %arg7[%c0_16, %c0_17] : memref<8x1xf32, #tpu.memory_space<vmem>>, vector<8x1xf32>
    tpu.vector_store %arg7[%c0_16, %c0_17], %21 {strides = array<i32>} : memref<8x1xf32, #tpu.memory_space<vmem>>, vector<8x1xf32>,
    %c0_i32_18 = arith.constant 0 : i32
    %23 = arith.cmpi eq, %arg1, %c0_i32_18 : i32
    %24 = arith.extui %23 : i1 to i32
    %c0_i32_19 = arith.constant 0 : i32
    %25 = arith.cmpi ne, %24, %c0_i32_19 : i32
    scf.if %25 {
      %c0_20 = arith.constant 0 : index
      %c0_21 = arith.constant 0 : index
      %26 = vector.load %arg6[%c0_20, %c0_21] : memref<8x1xf32, #tpu.memory_space<vmem>>, vector<8x1xf32>
      %cst_22 = arith.constant 1.000000e-16 : f32
      %27 = vector.broadcast %cst_22 : f32 to vector<8x1xf32>
      %28 = arith.maximumf %26, %27 : vector<8x1xf32>
      %29 = math.rsqrt %28 : vector<8x1xf32>
      %c0_23 = arith.constant 0 : index
      %c0_24 = arith.constant 0 : index
      %30 = vector.load %arg7[%c0_23, %c0_24] : memref<8x1xf32, #tpu.memory_space<vmem>>, vector<8x1xf32>
      %cst_25 = arith.constant 1.000000e-16 : f32
      %31 = vector.broadcast %cst_25 : f32 to vector<8x1xf32>
      %32 = arith.maximumf %30, %31 : vector<8x1xf32>
      %33 = math.rsqrt %32 : vector<8x1xf32>
      %34 = arith.mulf %29, %33 : vector<8x1xf32>
      %c0_26 = arith.constant 0 : index
      %c0_27 = arith.constant 0 : index
      %35 = vector.load %arg5[%c0_26, %c0_27] : memref<8x1xf32, #tpu.memory_space<vmem>>, vector<8x1xf32>
      %36 = arith.mulf %35, %34 : vector<8x1xf32>
      %c0_28 = arith.constant 0 : index
      %c0_29 = arith.constant 0 : index
      %37 = vector.load %arg4[%c0_28, %c0_29] : memref<8x1xf32, #tpu.memory_space<vmem>>, vector<8x1xf32>
      tpu.vector_store %arg4[%c0_28, %c0_29], %36 {strides = array<i32>} : memref<8x1xf32, #tpu.memory_space<vmem>>, vector<8x1xf32>,
    } else {
    }
    return
  }
  func.func @transform_0(%arg0: i32, %arg1: i32) -> (i32, i32) {
    %c0_i32 = arith.constant 0 : i32
    return %arg0, %arg1 : i32, i32
  }
  func.func @transform_1(%arg0: i32, %arg1: i32) -> (i32, i32) {
    %c0_i32 = arith.constant 0 : i32
    return %arg0, %arg1 : i32, i32
  }
  func.func @transform_2(%arg0: i32, %arg1: i32) -> (i32, i32) {
    %c0_i32 = arith.constant 0 : i32
    %c0_i32_0 = arith.constant 0 : i32
    return %arg0, %c0_i32 : i32, i32
  }
}

</mosaic_0001>

<llo_original>
// kernel: cosine_similarity_loss.1
$region0: #{cosine_similarity_loss.1}
  #allocation0 [shape = 'u32[]', space=smem, size = 0x4, offset = 0x4, fixed_abs, tag = 'smem constant byte address 0x4 - core index']
  #allocation1 [shape = 'u32[72,128]{1,0:T(1,128)}', space=vmem, size = 0x9000, scoped, tag = 'internal scratch']
  #allocation2 [shape = 'f32[8,1]{1,0:T(8,128)}', space=vmem, size = 0x1000, scoped, tag = 'scratch operand']
  #allocation3 [shape = 'f32[8,1]{1,0:T(8,128)}', space=vmem, size = 0x1000, scoped, tag = 'scratch operand']
  #allocation4 [shape = 'f32[8,1]{1,0:T(8,128)}', space=vmem, size = 0x1000, scoped, tag = 'scratch operand']
  %s0 = inlined_call_operand.hbm [shape: f32[8,32], index: 0, kind: input, shape index: {}]
  %s1 = inlined_call_operand.hbm [shape: f32[8,32], index: 1, kind: input, shape index: {}]
  %s2 = inlined_call_operand.vmem [shape: f32[8,1], index: 2, kind: output, shape index: {}]
  %s3 = sld [smem:[#allocation0]]
  $region34: #{cosine_similarity_loss.1} parent=0
    _
  %s5 = ssub.s32 1, %s3
  %s6 = scalar_select 0, %s5, %s3
  $region1: #{cosine_similarity_loss.1} parent=0
    #allocation5 [shape = 'u8[4096]{0}', space=vmem, size = 0x1000, scoped, tag = 'input window, operand 0, single buffered']
    #allocation6 [shape = 's32[1]{0}', space=sflag, size = 0x4, scoped, tag = 'scoped memory for cosine_similarity_loss.1']
    #allocation7 [shape = 'u8[4096]{0}', space=vmem, size = 0x1000, scoped, tag = 'input window, operand 1, single buffered']
    #allocation8 [shape = 's32[1]{0}', space=sflag, size = 0x4, scoped, tag = 'scoped memory for cosine_similarity_loss.1']
    %7 = vsyncpa [#allocation6], 0
    %8 = vsyncpa [#allocation8], 0
    // Predicated region
    $region2: #{cosine_similarity_loss.1} parent=1 // pred_check
      _
    $region3: #{cosine_similarity_loss.1} parent=1 // pred_check_branch
      %10 = sbr.rel (0) target = $region5
    $region4: #{cosine_similarity_loss.1} parent=1 // pred_region
      %12 = vsyncadd [#allocation6], 0
      %s14 = sshll.u32 %s0, 4
      %s15 = int_to_ptr.hbm [resolvable:$true] %s14
      %s16 = sshll.u32 [#allocation5], 4
      %s17 = int_to_ptr.vmem [resolvable:$true] %s16
      %19 = dma.hbm_to_vmem [thread:$0]  %s15, 128, %s17, [#allocation6]
    $region5: #{cosine_similarity_loss.1} parent=1 // pred_fallthru
      _
    // Predicated region
    $region6: #{cosine_similarity_loss.1} parent=1 // pred_check
      _
    $region7: #{cosine_similarity_loss.1} parent=1 // pred_check_branch
      %21 = sbr.rel (0) target = $region9
    $region8: #{cosine_similarity_loss.1} parent=1 // pred_region
      %23 = vsyncadd [#allocation8], 0
      %s25 = sshll.u32 %s1, 4
      %s26 = int_to_ptr.hbm [resolvable:$true] %s25
      %s27 = sshll.u32 [#allocation7], 4
      %s28 = int_to_ptr.vmem [resolvable:$true] %s27
      %30 = dma.hbm_to_vmem [thread:$0]  %s26, 128, %s28, [#allocation8]
    $region9: #{cosine_similarity_loss.1} parent=1 // pred_fallthru
      _
    // Predicated region
    $region10: #{cosine_similarity_loss.1} parent=1 // pred_check
      _
    $region11: #{cosine_similarity_loss.1} parent=1 // pred_check_branch
      %32 = sbr.rel (0) target = $region13
    $region12: #{cosine_similarity_loss.1} parent=1 // pred_region
      %34 = dma.done [#allocation6], 128
    $region13: #{cosine_similarity_loss.1} parent=1 // pred_fallthru
      _
    // Predicated region
    $region14: #{cosine_similarity_loss.1} parent=1 // pred_check
      _
    $region15: #{cosine_similarity_loss.1} parent=1 // pred_check_branch
      %36 = sbr.rel (0) target = $region17
    $region16: #{cosine_similarity_loss.1} parent=1 // pred_region
      %38 = dma.done [#allocation8], 128
    $region17: #{cosine_similarity_loss.1} parent=1 // pred_fallthru
      _
    %p39 = scmp.eq.s32.totalorder 0, 0
    // Predicated region
    $region18: #{cosine_similarity_loss.1} parent=1 // pred_check
      %p40 = pneg %p39
    $region19: #{cosine_similarity_loss.1} parent=1 // pred_check_branch
      %42 = sbr.rel (%p40) target = $region21
    $region20: #{cosine_similarity_loss.1} parent=1 // pred_region
      %vm43 = vcmask 7168
      %44 = vst.msk [vmem:[#allocation2] sm:$0xff] %vm43, 0.0
      %45 = vst.msk [vmem:[#allocation3] sm:$0xff] %vm43, 0.0
      %46 = vst.msk [vmem:[#allocation4] sm:$0xff] %vm43, 0.0
    $region21: #{cosine_similarity_loss.1} parent=1 // pred_fallthru
      _
    %v47 = vld [vmem:[#allocation5] sm:$0xff]
    %v48 = vld [vmem:[#allocation7] sm:$0xff]
    %v49 = vld [vmem:[#allocation2] sm:$0xff]
    %v50 = vmul.f32 %v47, %v48
    %vm51 = vcmask 261120
    %v52 = vsel %vm51, %v50, 0.0
    %53 = vadd.xlane.f32.xlu0 %v52
    %v54 = vpop.xlane.xlu0 %53
    %v55 = vadd.f32 %v49, %v54
    %vm56 = vcmask 7168
    %57 = vst.msk [vmem:[#allocation2] sm:$0xff] %vm56, %v55
    %v58 = vld [vmem:[#allocation3] sm:$0xff]
    %v59 = vmul.f32 %v47, %v47
    %v60 = vsel %vm51, %v59, 0.0
    %61 = vadd.xlane.f32.xlu0 %v60
    %v62 = vpop.xlane.xlu0 %61
    %v63 = vadd.f32 %v58, %v62
    %64 = vst.msk [vmem:[#allocation3] sm:$0xff] %vm56, %v63
    %v65 = vld [vmem:[#allocation4] sm:$0xff]
    %v66 = vmul.f32 %v48, %v48
    %v67 = vsel %vm51, %v66, 0.0
    %68 = vadd.xlane.f32.xlu0 %v67
    %v69 = vpop.xlane.xlu0 %68
    %v70 = vadd.f32 %v65, %v69
    %71 = vst.msk [vmem:[#allocation4] sm:$0xff] %vm56, %v70
    // Predicated region
    $region22: #{cosine_similarity_loss.1} parent=1 // pred_check
      %p72 = pneg %p39
    $region23: #{cosine_similarity_loss.1} parent=1 // pred_check_branch
      %74 = sbr.rel (%p72) target = $region25
    $region24: #{cosine_similarity_loss.1} parent=1 // pred_region
      %v75 = vld [vmem:[#allocation3] sm:$0xff]
      %v76 = vmax.f32 %v75, 1e-16
      %v77 = vrsqrt.pop %v76
      %v78 = vmul.f32 %v77, %v76
      %v79 = vmul.f32 %v78, %v77
      %v80 = vmul.f32 0.5, %v79
      %v81 = vsub.f32 1.5, %v80
      %v82 = vmul.f32 %v77, %v81
      %vm83 = vweird.f32 %v76
      %vm84 = vweird.f32 %v77
      %vm85 = vmor %vm83, %vm84
      %v86 = vsel %vm85, %v77, %v82
      %v87 = vld [vmem:[#allocation4] sm:$0xff]
      %v88 = vmax.f32 %v87, 1e-16
      %v89 = vrsqrt.pop %v88
      %v90 = vmul.f32 %v89, %v88
      %v91 = vmul.f32 %v90, %v89
      %v92 = vmul.f32 0.5, %v91
      %v93 = vsub.f32 1.5, %v92
      %v94 = vmul.f32 %v89, %v93
      %vm95 = vweird.f32 %v88
      %vm96 = vweird.f32 %v89
      %vm97 = vmor %vm95, %vm96
      %v98 = vsel %vm97, %v89, %v94
      %v99 = vmul.f32 %v86, %v98
      %v100 = vld [vmem:[#allocation2] sm:$0xff]
      %v101 = vmul.f32 %v100, %v99
      %102 = vst.msk [vmem:[%s2] sm:$0xff] %vm56, %v101
    $region25: #{cosine_similarity_loss.1} parent=1 // pred_fallthru
      _
    // Predicated region
    $region26: #{cosine_similarity_loss.1} parent=1 // pred_check
      _
    $region27: #{cosine_similarity_loss.1} parent=1 // pred_check_branch
      %104 = sbr.rel (0) target = $region29
    $region28: #{cosine_similarity_loss.1} parent=1 // pred_region
      _
    $region29: #{cosine_similarity_loss.1} parent=1 // pred_fallthru
      _
    // Predicated region
    $region30: #{cosine_similarity_loss.1} parent=1 // pred_check
      _
    $region31: #{cosine_similarity_loss.1} parent=1 // pred_check_branch
      %106 = sbr.rel (0) target = $region33
    $region32: #{cosine_similarity_loss.1} parent=1 // pred_region
      _
    $region33: #{cosine_similarity_loss.1} parent=1 // pred_fallthru
      _
    %107 = vsyncpa [#allocation6], 1
    %108 = vsyncpa [#allocation8], 1

</llo_original>
